<compile_context>
chip_gen: v6e
topology: v6e:2x2x1
jax: 0.10.0
libtpu: 0.0.40
codegen_flags: <defaults>
</compile_context>

<pallas_src>
import jax
import jax.numpy as jnp
from jax import lax
from jax.experimental import pallas as pl
from jax.experimental.pallas import tpu as pltpu


def _round_up(x, m):
    return (x + m - 1) // m * m


def _gather_onehot_kernel(idx_ref, x_ref, o_ref):
    """out[b, t, :] = x[b, idx[b, t], :] via a one-hot matmul on the MXU.

    idx_ref: (bb, 1, To) int32 (VMEM), padding entries are -1 (never match).
    x_ref:   (bb, T, C)
    o_ref:   (bb, To, C)   with To a multiple of 8 -> unmasked full-width stores.
    """
    idx = idx_ref[:, 0, :]                                   # (bb, To)
    bb, To = idx.shape
    T = x_ref.shape[1]
    # One-hot selection matrix; out-of-range / padded indexes give all-zero rows,
    # so no dynamic VMEM addressing (bounds-safe by construction).
    gene_pos = lax.broadcasted_iota(jnp.int32, (bb, To, T), 2)
    onehot = (gene_pos == idx[:, :, None]).astype(x_ref.dtype)
    gathered = jnp.einsum("btk,bkc->btc", onehot, x_ref[...],
                          preferred_element_type=jnp.float32)
    o_ref[...] = gathered.astype(o_ref.dtype)


def _pick_b_block(B, T, C, out_Tp, dtype, budget_bytes=12 * 1024 * 1024):
    """Largest divisor of B whose (double-buffered) working set fits a VMEM budget."""
    itemsize = jnp.dtype(dtype).itemsize

    def working_set(bb):
        # double-buffered input/output blocks + in-kernel one-hot/iota intermediates
        blocks = 2 * bb * (out_Tp * 4 + T * C * itemsize + out_Tp * C * itemsize)
        scratch = bb * out_Tp * T * (itemsize + 4)
        return blocks + scratch

    bb = B
    while bb > 1 and (B % bb != 0 or working_set(bb) > budget_bytes):
        bb -= 1
    return bb


def gene_shuffle_gather(genes, forward_indexes, out_T, *, b_block=None):
    """Pallas gather: out[b, t, :] = genes[b, forward_indexes[b, t], :], t in [0, out_T)."""
    B, T, C = genes.shape
    out_Tp = _round_up(max(out_T, 1), 8)          # sublane-align output rows; crop below

    idx = forward_indexes[:, :out_T].astype(jnp.int32)
    if out_Tp > out_T:
        # -1 never matches the iota -> padded output rows are zeros (cropped anyway)
        idx = jnp.pad(idx, ((0, 0), (0, out_Tp - out_T)), constant_values=-1)
    idx = idx.reshape(B, 1, out_Tp)               # lane-major layout, (1, out_Tp) tile

    if b_block is None:
        b_block = _pick_b_block(B, T, C, out_Tp, genes.dtype)

    out = pl.pallas_call(
        _gather_onehot_kernel,
        out_shape=jax.ShapeDtypeStruct((B, out_Tp, C), genes.dtype),
        grid_spec=pltpu.PrefetchScalarGridSpec(
            num_scalar_prefetch=0,
            grid=(B // b_block,),
            in_specs=[pl.BlockSpec((b_block, 1, out_Tp), lambda b: (b, 0, 0)),
                      pl.BlockSpec((b_block, T, C), lambda b: (b, 0, 0))],
            out_specs=pl.BlockSpec((b_block, out_Tp, C), lambda b: (b, 0, 0)),
        ),
        compiler_params=pltpu.CompilerParams(
            dimension_semantics=("parallel",),    # batch is independent -> 2 TCs on v7x
            vmem_limit_bytes=32 * 1024 * 1024),
    )(idx, genes)
    return out[:, :out_T]


def gene_shuffle_forward(key, genes, ratio, mask=True):
    """JAX/Pallas equivalent of GeneShuffle.forward.

    Returns (shuffled_genes, forward_indexes, backward_indexes); indexes are int32.
    """
    B, T, C = genes.shape
    # Matches the reference's `int(T * (1 - self.ratio))` float-truncation rounding.
    remain_T = int(T * (1 - ratio))

    keys = jax.random.split(key, B)
    forward_indexes = jax.vmap(
        lambda k: jax.random.permutation(k, T))(keys).astype(jnp.int32)
    backward_indexes = jnp.argsort(forward_indexes, axis=-1).astype(jnp.int32)

    out_T = remain_T if mask else T
    shuffled = gene_shuffle_gather(genes, forward_indexes, out_T)
    return shuffled, forward_indexes, backward_indexes


if __name__ == "__main__":
    # Small shapes consistent with the module's forward: genes [B, T, C].
    B, T, C = 2, 16, 128
    ratio = 0.25                      # remain_T = int(16 * 0.75) = 12 (exercises padding)

    root = jax.random.PRNGKey(0)
    k_data, k_perm = jax.random.split(root)
    genes = jax.random.normal(k_data, (B, T, C), dtype=jnp.float32)

    # Masked path (MAE encoder usage).
    shuffled, fwd, bwd = gene_shuffle_forward(k_perm, genes, ratio, mask=True)
    shuffled = jax.block_until_ready(shuffled)
    fwd = jax.block_until_ready(fwd)
    bwd = jax.block_until_ready(bwd)

    remain_T = int(T * (1 - ratio))
    ref = genes[jnp.arange(B)[:, None], fwd][:, :remain_T]
    assert shuffled.shape == (B, remain_T, C)
    assert fwd.shape == (B, T) and bwd.shape == (B, T)
    assert jnp.allclose(shuffled, ref)
    # backward must invert forward
    assert jnp.all(jnp.take_along_axis(fwd, bwd, axis=1) ==
                   jnp.arange(T, dtype=jnp.int32)[None, :])

    # Unmasked path (out_T == T).
    full, fwd2, _ = gene_shuffle_forward(k_perm, genes, ratio, mask=False)
    full = jax.block_until_ready(full)
    ref_full = genes[jnp.arange(B)[:, None], fwd2]
    assert full.shape == (B, T, C)
    assert jnp.allclose(full, ref_full)

    print("KERNEL_OK")
</pallas_src>

<mosaic_0001>
module attributes {stable_mosaic.version = 11 : i64} {
  func.func @_gather_onehot_kernel(%arg0: i32, %arg1: memref<2x1x16xi32, #tpu.memory_space<vmem>>, %arg2: memref<2x16x128xf32, #tpu.memory_space<vmem>>, %arg3: memref<2x16x128xf32, #tpu.memory_space<vmem>>) attributes {dimension_semantics = [#tpu.dimension_semantics<parallel>], iteration_bounds = array<i64: 1>, scalar_prefetch = 0 : i64, scratch_operands = 0 : i64, tpu.core_type = #tpu.core_type<tc>, window_params = [{transform_indices = @transform_0, window_bounds = array<i64: 2, 1, 16>}, {transform_indices = @transform_1, window_bounds = array<i64: 2, 16, 128>}, {transform_indices = @transform_2, window_bounds = array<i64: 2, 16, 128>}]} {
    %c0 = arith.constant 0 : index
    %c0_0 = arith.constant 0 : index
    %c0_1 = arith.constant 0 : index
    %0 = vector.load %arg1[%c0, %c0_0, %c0_1] : memref<2x1x16xi32, #tpu.memory_space<vmem>>, vector<2x1x16xi32>
    %1 = vector.shape_cast %0 : vector<2x1x16xi32> to vector<2x16xi32>
    %2 = tpu.iota {dimensions = array<i32: 2>} : vector<2x16x16xi32>
    %3 = vector.shape_cast %1 : vector<2x16xi32> to vector<2x16x1xi32>
    %4 = vector.broadcast %3 : vector<2x16x1xi32> to vector<2x16x16xi32>
    %5 = arith.cmpi eq, %2, %4 : vector<2x16x16xi32>
    %6 = arith.extui %5 : vector<2x16x16xi1> to vector<2x16x16xi32>
    %7 = arith.sitofp %6 : vector<2x16x16xi32> to vector<2x16x16xf32>
    %c0_2 = arith.constant 0 : index
    %c0_3 = arith.constant 0 : index
    %c0_4 = arith.constant 0 : index
    %8 = vector.load %arg2[%c0_2, %c0_3, %c0_4] : memref<2x16x128xf32, #tpu.memory_space<vmem>>, vector<2x16x128xf32>
    "tpu.trace_start"() <{level = 10 : i32, message = "btk,bkc->btc"}> : () -> ()
    %cst = arith.constant dense<0.000000e+00> : vector<2x16x128xf32>
    %9 = tpu.matmul %7, %8, %cst {dimension_numbers = #tpu.dot_dimension_numbers<[2], [1], [1], [2], [0, 0, 0, 1, 1, 2], [0], [0]>} : vector<2x16x16xf32>, vector<2x16x128xf32>, vector<2x16x128xf32> -> vector<2x16x128xf32>
    "tpu.trace_stop"() : () -> ()
    %c0_5 = arith.constant 0 : index
    %c0_6 = arith.constant 0 : index
    %c0_7 = arith.constant 0 : index
    %10 = vector.load %arg3[%c0_5, %c0_6, %c0_7] : memref<2x16x128xf32, #tpu.memory_space<vmem>>, vector<2x16x128xf32>
    tpu.vector_store %arg3[%c0_5, %c0_6, %c0_7], %9 {strides = array<i32>} : memref<2x16x128xf32, #tpu.memory_space<vmem>>, vector<2x16x128xf32>,
    return
  }
  func.func @transform_0(%arg0: i32) -> (i32, i32, i32) {
    %c0_i32 = arith.constant 0 : i32
    %c0_i32_0 = arith.constant 0 : i32
    %c0_i32_1 = arith.constant 0 : i32
    return %arg0, %c0_i32, %c0_i32_0 : i32, i32, i32
  }
  func.func @transform_1(%arg0: i32) -> (i32, i32, i32) {
    %c0_i32 = arith.constant 0 : i32
    %c0_i32_0 = arith.constant 0 : i32
    %c0_i32_1 = arith.constant 0 : i32
    return %arg0, %c0_i32, %c0_i32_0 : i32, i32, i32
  }
  func.func @transform_2(%arg0: i32) -> (i32, i32, i32) {
    %c0_i32 = arith.constant 0 : i32
    %c0_i32_0 = arith.constant 0 : i32
    %c0_i32_1 = arith.constant 0 : i32
    return %arg0, %c0_i32, %c0_i32_0 : i32, i32, i32
  }
}

</mosaic_0001>

<llo_original>
// kernel: tpu_custom_call.1
$region0: #{tpu_custom_call.1}
  #allocation0 [shape = 'u32[]', space=smem, size = 0x4, offset = 0x4, fixed_abs, tag = 'smem constant byte address 0x4 - core index']
  #allocation1 [shape = 'u32[144,128]{1,0:T(1,128)}', space=vmem, size = 0x12000, scoped, tag = 'internal scratch']
  %s0 = inlined_call_operand.hbm [shape: s32[2,1,16], index: 0, kind: input, shape index: {}]
  %s1 = inlined_call_operand.hbm [shape: f32[2,16,128], index: 1, kind: input, shape index: {}]
  %s2 = inlined_call_operand.hbm [shape: f32[2,16,128], index: 2, kind: output, shape index: {}]
  %s3 = sld [smem:[#allocation0]]
  $region26: #{tpu_custom_call.1} parent=0
    _
  %s5 = ssub.s32 1, %s3
  %s6 = scalar_select 0, %s5, %s3
  $region1: #{tpu_custom_call.1} parent=0
    #allocation2 [shape = 'u8[1024]{0}', space=vmem, size = 0x400, scoped, tag = 'input window, operand 0, single buffered']
    #allocation3 [shape = 's32[1]{0}', space=sflag, size = 0x4, scoped, tag = 'scoped memory for tpu_custom_call.1']
    #allocation4 [shape = 's32[1]{0}', space=sflag, size = 0x4, scoped, tag = 'scoped memory for tpu_custom_call.1']
    #allocation5 [shape = 'u8[16384]{0}', space=vmem, size = 0x4000, scoped, tag = 'input window, operand 1, single buffered']
    #allocation6 [shape = 's32[1]{0}', space=sflag, size = 0x4, scoped, tag = 'scoped memory for tpu_custom_call.1']
    #allocation7 [shape = 'u8[16384]{0}', space=vmem, size = 0x4000, scoped, tag = 'output window, operand 0, single buffered']
    %7 = vsyncpa [#allocation3], 0
    %8 = vsyncpa [#allocation6], 0
    %9 = vsyncpa [#allocation4], 0
    // Predicated region
    $region2: #{tpu_custom_call.1} parent=1 // pred_check
      _
    $region3: #{tpu_custom_call.1} parent=1 // pred_check_branch
      %11 = sbr.rel (0) target = $region5
    $region4: #{tpu_custom_call.1} parent=1 // pred_region
      %s13 = ssub.s32 32, 32
      %14 = vsyncadd [#allocation3], %s13
      %s15 = sshll.u32 [#allocation2], 4
      %s16 = int_to_ptr.vmem [resolvable:$true] %s15
      %21 = dma.hbm_to_vmem [thread:$0]  %s0, 32, %s16, [#allocation3], 16, 16, 1
    $region5: #{tpu_custom_call.1} parent=1 // pred_fallthru
      _
    // Predicated region
    $region6: #{tpu_custom_call.1} parent=1 // pred_check
      _
    $region7: #{tpu_custom_call.1} parent=1 // pred_check_branch
      %23 = sbr.rel (0) target = $region9
    $region8: #{tpu_custom_call.1} parent=1 // pred_region
      %s25 = ssub.s32 512, 512
      %26 = vsyncadd [#allocation6], %s25
      %s27 = sshll.u32 [#allocation5], 4
      %s28 = int_to_ptr.vmem [resolvable:$true] %s27
      %33 = dma.hbm_to_vmem [thread:$0]  %s1, 512, %s28, [#allocation6], 128, 128, 8
    $region9: #{tpu_custom_call.1} parent=1 // pred_fallthru
      _
    // Predicated region
    $region10: #{tpu_custom_call.1} parent=1 // pred_check
      _
    $region11: #{tpu_custom_call.1} parent=1 // pred_check_branch
      %35 = sbr.rel (0) target = $region13
    $region12: #{tpu_custom_call.1} parent=1 // pred_region
      %36 = dma.done [#allocation3], 32
    $region13: #{tpu_custom_call.1} parent=1 // pred_fallthru
      _
    // Predicated region
    $region14: #{tpu_custom_call.1} parent=1 // pred_check
      _
    $region15: #{tpu_custom_call.1} parent=1 // pred_check_branch
      %38 = sbr.rel (0) target = $region17
    $region16: #{tpu_custom_call.1} parent=1 // pred_region
      %39 = dma.done [#allocation6], 512
    $region17: #{tpu_custom_call.1} parent=1 // pred_fallthru
      _
    %v40 = vld [vmem:[#allocation2] sm:$0x1]
    %v41 = vld [vmem:[#allocation2 + $0x1] sm:$0x1]
    %v42 = vlaneseq
    %v43 = vand.u32 %v42, 127
    %v44 = vlaneseq
    %v45 = vshrl.u32 %v44, 7
    %v46 = vsub.s32 0, %v45
    %v47 = vrot.slane %v40, %v46
    %49 = vbcast.lane.b32.xlu0 %v47, 256
    %v50 = vpop.permute.xlu0 %49
    %s52 = sor.u32 256, 8
    %53 = vbcast.lane.b32.xlu0 %v47, %s52
    %v54 = vpop.permute.xlu0 %53
    %v55 = vlaneseq
    %v56 = vshrl.u32 %v55, 7
    %v57 = vsub.s32 0, %v56
    %v58 = vrot.slane %v41, %v57
    %60 = vbcast.lane.b32.xlu0 %v58, 256
    %v61 = vpop.permute.xlu0 %60
    %s63 = sor.u32 256, 8
    %64 = vbcast.lane.b32.xlu0 %v58, %s63
    %v65 = vpop.permute.xlu0 %64
    %vm66 = vcmp.eq.s32.totalorder %v43, %v50
    %vm67 = vcmp.eq.s32.totalorder %v43, %v54
    %vm68 = vcmp.eq.s32.totalorder %v43, %v61
    %vm69 = vcmp.eq.s32.totalorder %v43, %v65
    %v70 = vsel %vm66, 1, 0
    %v71 = vsel %vm67, 1, 0
    %v72 = vsel %vm68, 1, 0
    %v73 = vsel %vm69, 1, 0
    %v74 = vcvt.s32.f32 %v70
    %v75 = vcvt.s32.f32 %v71
    %v76 = vcvt.s32.f32 %v72
    %v77 = vcvt.s32.f32 %v73
    %v78 = vld [vmem:[#allocation5] sm:$0xff]
    %v79 = vld [vmem:[#allocation5 + $0x8] sm:$0xff]
    %v80 = vld [vmem:[#allocation5 + $0x10] sm:$0xff]
    %v81 = vld [vmem:[#allocation5 + $0x18] sm:$0xff]
    %vm82 = vcmask 130048
    %v84 = vsel %vm82, %v74, 0
    %v87 = vsel %vm82, %v75, 0
    %89 = vmatprep.subr.mxu0 0.0
    %90 = vmatpush1.msra.mxu0 0.0
    %91 = vmatprep.subr.mxu0 0.0
    %92 = vmatpush1.msra.mxu0 0.0
    %93 = vmatprep.subr.mxu0 0.0
    %94 = vmatpush1.msra.mxu0 0.0
    %95 = vmatprep.subr.mxu0 0.0
    %96 = vmatpush1.msra.mxu0 0.0
    %97 = vmatprep.subr.mxu0 0.0
    %98 = vmatpush1.msra.mxu0 0.0
    %99 = vmatprep.subr.mxu0 0.0
    %100 = vmatpush1.msra.mxu0 0.0
    %101 = vmatprep.subr.mxu0 0.0
    %102 = vmatpush1.msra.mxu0 0.0
    %103 = vmatprep.subr.mxu0 0.0
    %104 = vmatpush1.msra.mxu0 0.0
    %105 = vmatprep.subr.mxu0 0.0
    %106 = vmatpush1.msra.mxu0 0.0
    %107 = vmatprep.subr.mxu0 0.0
    %108 = vmatpush1.msra.mxu0 0.0
    %109 = vmatprep.subr.mxu0 0.0
    %110 = vmatpush1.msra.mxu0 0.0
    %111 = vmatprep.subr.mxu0 0.0
    %112 = vmatpush1.msra.mxu0 0.0
    %113 = vmatprep.subr.mxu0 0.0
    %114 = vmatpush1.msra.mxu0 0.0
    %115 = vmatprep.subr.mxu0 0.0
    %116 = vmatpush1.msra.mxu0 0.0
    %117 = vmatprep.subr.mxu0 0.0
    %118 = vmatpush1.msra.mxu0 %v79
    %119 = vmatprep.subr.mxu0 0.0
    %120 = vmatpush1.msra.mxu0 %v78
    %121 = vmatprep.subr.mxu0 0.0
    %122 = vmatpush2.msra.mxu0 0.0
    %123 = vmatprep.subr.mxu0 0.0
    %124 = vmatpush2.msra.mxu0 0.0
    %125 = vmatprep.subr.mxu0 0.0
    %126 = vmatpush2.msra.mxu0 0.0
    %127 = vmatprep.subr.mxu0 0.0
    %128 = vmatpush2.msra.mxu0 0.0
    %129 = vmatprep.subr.mxu0 0.0
    %130 = vmatpush2.msra.mxu0 0.0
    %131 = vmatprep.subr.mxu0 0.0
    %132 = vmatpush2.msra.mxu0 0.0
    %133 = vmatprep.subr.mxu0 0.0
    %134 = vmatpush2.msra.mxu0 0.0
    %135 = vmatprep.subr.mxu0 0.0
    %136 = vmatpush2.msra.mxu0 0.0
    %137 = vmatprep.subr.mxu0 0.0
    %138 = vmatpush2.msra.mxu0 0.0
    %139 = vmatprep.subr.mxu0 0.0
    %140 = vmatpush2.msra.mxu0 0.0
    %141 = vmatprep.subr.mxu0 0.0
    %142 = vmatpush2.msra.mxu0 0.0
    %143 = vmatprep.subr.mxu0 0.0
    %144 = vmatpush2.msra.mxu0 0.0
    %145 = vmatprep.subr.mxu0 0.0
    %146 = vmatpush2.msra.mxu0 0.0
    %147 = vmatprep.subr.mxu0 0.0
    %148 = vmatpush2.msra.mxu0 0.0
    %149 = vmatprep.subr.mxu0 0.0
    %150 = vmatpush2.msra.mxu0 0.0
    %151 = vmatprep.subr.mxu0 0.0
    %152 = vmatpush2.msra.mxu0 0.0
    %153 = vmatprep.mubr.f32.mxu0 0.0
    %154 = vmatmul.mubr.f32.gmra.mxu0 %v84
    %v155 = vpop.f32.mrf.mxu0
    %v156 = vadd.f32 0.0, %v155
    %v157 = vpop.f32.mrf.mxu0
    %158 = vmatprep.mubr.f32.mxu0 0.0
    %159 = vmatmul.mubr.f32.gmra.mxu0 %v87
    %v160 = vpop.f32.mrf.mxu0
    %v161 = vadd.f32 0.0, %v160
    %v162 = vpop.f32.mrf.mxu0
    %163 = vdwg.mxu0
    %v165 = vsel %vm82, %v76, 0
    %v168 = vsel %vm82, %v77, 0
    %170 = vmatprep.subr.mxu0 0.0
    %171 = vmatpush1.msra.mxu0 0.0
    %172 = vmatprep.subr.mxu0 0.0
    %173 = vmatpush1.msra.mxu0 0.0
    %174 = vmatprep.subr.mxu0 0.0
    %175 = vmatpush1.msra.mxu0 0.0
    %176 = vmatprep.subr.mxu0 0.0
    %177 = vmatpush1.msra.mxu0 0.0
    %178 = vmatprep.subr.mxu0 0.0
    %179 = vmatpush1.msra.mxu0 0.0
    %180 = vmatprep.subr.mxu0 0.0
    %181 = vmatpush1.msra.mxu0 0.0
    %182 = vmatprep.subr.mxu0 0.0
    %183 = vmatpush1.msra.mxu0 0.0
    %184 = vmatprep.subr.mxu0 0.0
    %185 = vmatpush1.msra.mxu0 0.0
    %186 = vmatprep.subr.mxu0 0.0
    %187 = vmatpush1.msra.mxu0 0.0
    %188 = vmatprep.subr.mxu0 0.0
    %189 = vmatpush1.msra.mxu0 0.0
    %190 = vmatprep.subr.mxu0 0.0
    %191 = vmatpush1.msra.mxu0 0.0
    %192 = vmatprep.subr.mxu0 0.0
    %193 = vmatpush1.msra.mxu0 0.0
    %194 = vmatprep.subr.mxu0 0.0
    %195 = vmatpush1.msra.mxu0 0.0
    %196 = vmatprep.subr.mxu0 0.0
    %197 = vmatpush1.msra.mxu0 0.0
    %198 = vmatprep.subr.mxu0 0.0
    %199 = vmatpush1.msra.mxu0 %v81
    %200 = vmatprep.subr.mxu0 0.0
    %201 = vmatpush1.msra.mxu0 %v80
    %202 = vmatprep.subr.mxu0 0.0
    %203 = vmatpush2.msra.mxu0 0.0
    %204 = vmatprep.subr.mxu0 0.0
    %205 = vmatpush2.msra.mxu0 0.0
    %206 = vmatprep.subr.mxu0 0.0
    %207 = vmatpush2.msra.mxu0 0.0
    %208 = vmatprep.subr.mxu0 0.0
    %209 = vmatpush2.msra.mxu0 0.0
    %210 = vmatprep.subr.mxu0 0.0
    %211 = vmatpush2.msra.mxu0 0.0
    %212 = vmatprep.subr.mxu0 0.0
    %213 = vmatpush2.msra.mxu0 0.0
    %214 = vmatprep.subr.mxu0 0.0
    %215 = vmatpush2.msra.mxu0 0.0
    %216 = vmatprep.subr.mxu0 0.0
    %217 = vmatpush2.msra.mxu0 0.0
    %218 = vmatprep.subr.mxu0 0.0
    %219 = vmatpush2.msra.mxu0 0.0
    %220 = vmatprep.subr.mxu0 0.0
    %221 = vmatpush2.msra.mxu0 0.0
    %222 = vmatprep.subr.mxu0 0.0
    %223 = vmatpush2.msra.mxu0 0.0
    %224 = vmatprep.subr.mxu0 0.0
    %225 = vmatpush2.msra.mxu0 0.0
    %226 = vmatprep.subr.mxu0 0.0
    %227 = vmatpush2.msra.mxu0 0.0
    %228 = vmatprep.subr.mxu0 0.0
    %229 = vmatpush2.msra.mxu0 0.0
    %230 = vmatprep.subr.mxu0 0.0
    %231 = vmatpush2.msra.mxu0 0.0
    %232 = vmatprep.subr.mxu0 0.0
    %233 = vmatpush2.msra.mxu0 0.0
    %234 = vmatprep.mubr.f32.mxu0 0.0
    %235 = vmatmul.mubr.f32.gmra.mxu0 %v165
    %v236 = vpop.f32.mrf.mxu0
    %v237 = vadd.f32 0.0, %v236
    %v238 = vpop.f32.mrf.mxu0
    %239 = vmatprep.mubr.f32.mxu0 0.0
    %240 = vmatmul.mubr.f32.gmra.mxu0 %v168
    %v241 = vpop.f32.mrf.mxu0
    %v242 = vadd.f32 0.0, %v241
    %v243 = vpop.f32.mrf.mxu0
    %244 = vdwg.mxu0
    %245 = vst [vmem:[#allocation7] sm:$0xff] %v156
    %246 = vst [vmem:[#allocation7 + $0x8] sm:$0xff] %v161
    %247 = vst [vmem:[#allocation7 + $0x10] sm:$0xff] %v237
    %248 = vst [vmem:[#allocation7 + $0x18] sm:$0xff] %v242
    // Predicated region
    $region18: #{tpu_custom_call.1} parent=1 // pred_check
      _
    $region19: #{tpu_custom_call.1} parent=1 // pred_check_branch
      %250 = sbr.rel (0) target = $region21
    $region20: #{tpu_custom_call.1} parent=1 // pred_region
      %s252 = ssub.s32 512, 512
      %253 = vsyncadd [#allocation4], %s252
      %s254 = sshll.u32 [#allocation7], 4
      %s255 = int_to_ptr.vmem [resolvable:$true] %s254
      %260 = dma.vmem_to_hbm [thread:$0]  %s255, 512, %s2, [#allocation4], 128, 128, 8
    $region21: #{tpu_custom_call.1} parent=1 // pred_fallthru
      _
    // Predicated region
    $region22: #{tpu_custom_call.1} parent=1 // pred_check
      _
    $region23: #{tpu_custom_call.1} parent=1 // pred_check_branch
      %262 = sbr.rel (0) target = $region25
    $region24: #{tpu_custom_call.1} parent=1 // pred_region
      %263 = dma.done [#allocation4], 512
    $region25: #{tpu_custom_call.1} parent=1 // pred_fallthru
      _
    %264 = vsyncpa [#allocation3], 1
    %265 = vsyncpa [#allocation6], 1
    %266 = vsyncpa [#allocation4], 1

</llo_original>
